<compile_context>
chip_gen: v7x
topology: tpu7x:2x2x1
jax: 0.10.0
libtpu: 0.0.40
codegen_flags: <defaults>
</compile_context>

<pallas_src>
import jax
import jax.numpy as jnp
from jax.experimental import pallas as pl
from jax.experimental.pallas import tpu as pltpu

# Logical dims (PyTorch FashionNetwork).
D_IN, D_H1, D_H2, D_OUT = 784, 256, 128, 10
# Lane-dense output: zero-pad W3 columns, b3 pad = -1e30 so padded classes never win.
D_OUT_PAD = 128
_NEG_INF = -1e30


def _round_up(x, m):
    return (x + m - 1) // m * m


def _pick_batch_tile(B):
    """Batch tile: multiple of 16 (bf16 min sublane tile).  Mid-size batches get
    >= 2 grid steps so both v7x TensorCores receive work; large batches cap at
    TB=1024 to amortize the ~0.35 us per-grid-step overhead (v5e/v6e)."""
    B16 = _round_up(B, 16)
    if B16 <= 16:
        return 16
    return int(min(1024, _round_up(pl.cdiv(B16, 2), 16)))


def _mlp_kernel(x_ref, w1_ref, b1_ref, w2_ref, b2_ref, w3_ref, b3_ref, o_ref):
    # x arrives as bf16 (cast done in the wrapper); bf16 on the MXU, f32
    # accumulation, f32 VPU/EUP math for bias/ReLU/log_softmax.
    h1 = jnp.dot(x_ref[...], w1_ref[...], preferred_element_type=jnp.float32)
    h1 = jnp.maximum(h1 + b1_ref[...], 0.0)

    h2 = jnp.dot(h1.astype(jnp.bfloat16), w2_ref[...],
                 preferred_element_type=jnp.float32)
    h2 = jnp.maximum(h2 + b2_ref[...], 0.0)

    logits = jnp.dot(h2.astype(jnp.bfloat16), w3_ref[...],
                     preferred_element_type=jnp.float32)
    logits = logits + b3_ref[...]          # padded classes sit at ~ -1e30

    # log_softmax over the lane-dense, 128-wide class axis (f32 throughout).
    m = jnp.max(logits, axis=-1, keepdims=True)
    shifted = logits - m
    lse = jnp.log(jnp.sum(jnp.exp(shifted), axis=-1, keepdims=True))
    o_ref[...] = (shifted - lse).astype(o_ref.dtype)


def prepare_kernel_params(params):
    """Cast the logical f32 (in, out)-layout params for the kernel.  Only the
    output layer is padded (10 -> 128 classes); W1 stays at (784, 256)."""
    w3 = jnp.zeros((D_H2, D_OUT_PAD), jnp.float32).at[:, :D_OUT].set(params["w3"])
    b3 = jnp.full((1, D_OUT_PAD), _NEG_INF, jnp.float32).at[:, :D_OUT].set(params["b3"])
    return {
        "w1": params["w1"].astype(jnp.bfloat16),
        "b1": params["b1"].astype(jnp.float32),
        "w2": params["w2"].astype(jnp.bfloat16),
        "b2": params["b2"].astype(jnp.float32),
        "w3": w3.astype(jnp.bfloat16),
        "b3": b3,
    }


def fashion_network_forward(x, params, *, batch_tile=None):
    """x: (B, 784) float32.  params: logical f32 dict of w1,b1,w2,b2,w3,b3 in
    (in_features, out_features) layout (nn.Linear weights pre-transposed)."""
    kp = prepare_kernel_params(params)
    B = x.shape[0]

    if batch_tile is None:
        TB = _pick_batch_tile(B)
    else:
        if batch_tile <= 0 or batch_tile % 16 != 0:
            raise ValueError("batch_tile must be a positive multiple of 16 "
                             "(bf16 sublane tile)")
        TB = batch_tile
    B_pad = _round_up(B, TB)

    # Single wrapper op: cast x to bf16 (halves the dominant HBM stream); pad
    # only the batch axis, only when needed.  No feature padding — the
    # (TB, 784) block equals the full feature extent, Mosaic lane-pads
    # internally at zero HBM cost.
    x_in = x.astype(jnp.bfloat16)
    if B_pad != B:
        x_in = jnp.pad(x_in, ((0, B_pad - B), (0, 0)))

    weight_bytes = sum(int(v.size) * v.dtype.itemsize for v in kp.values())

    cost = pl.CostEstimate(
        flops=2 * B_pad * (D_IN * D_H1 + D_H1 * D_H2 + D_H2 * D_OUT_PAD),
        transcendentals=B_pad * (D_OUT_PAD + 1),
        bytes_accessed=(B_pad * D_IN * 2          # x, bf16
                        + B_pad * D_OUT_PAD * 4   # out, f32
                        + weight_bytes),
    )

    # VMEM: double-buffered x/out tiles + resident weights + f32 intermediates.
    # Kept well under v7x's 64 MiB physical VMEM.
    vmem_bytes = (2 * TB * D_IN * 2
                  + 2 * TB * D_OUT_PAD * 4
                  + 2 * weight_bytes
                  + TB * (D_H1 + D_H2 + D_OUT_PAD) * 4)
    vmem_limit = int(min(48 << 20, max(16 << 20, 2 * vmem_bytes)))

    # Weights/biases stay VMEM-resident via constant index_maps.
    # (Optional pl.Buffered(1) on these would save one redundant ~0.5 MiB buffer
    #  set; skipped as negligible.)
    const = lambda shape: pl.BlockSpec(shape, lambda i: (0, 0))

    out = pl.pallas_call(
        _mlp_kernel,
        out_shape=jax.ShapeDtypeStruct((B_pad, D_OUT_PAD), jnp.float32),
        grid=(B_pad // TB,),
        in_specs=[
            pl.BlockSpec((TB, D_IN), lambda i: (i, 0)),   # x: tiled over batch
            const(kp["w1"].shape), const(kp["b1"].shape),
            const(kp["w2"].shape), const(kp["b2"].shape),
            const(kp["w3"].shape), const(kp["b3"].shape),
        ],
        out_specs=pl.BlockSpec((TB, D_OUT_PAD), lambda i: (i, 0)),
        compiler_params=pltpu.CompilerParams(
            dimension_semantics=("parallel",),   # megacore sharding on v7x
            vmem_limit_bytes=vmem_limit,
        ),
        cost_estimate=cost,
    )(x_in, kp["w1"], kp["b1"], kp["w2"], kp["b2"], kp["w3"], kp["b3"])

    return out[:B, :D_OUT]


def init_params(key):
    """Deterministic init mimicking nn.Linear's U(-1/sqrt(fan_in), 1/sqrt(fan_in)).
    Weights stored in (in_features, out_features) layout."""
    dims = [(D_IN, D_H1), (D_H1, D_H2), (D_H2, D_OUT)]
    params = {}
    keys = jax.random.split(key, 2 * len(dims))
    for idx, (fan_in, fan_out) in enumerate(dims):
        bound = 1.0 / jnp.sqrt(jnp.float32(fan_in))
        w = jax.random.uniform(keys[2 * idx], (fan_in, fan_out),
                               minval=-bound, maxval=bound, dtype=jnp.float32)
        b = jax.random.uniform(keys[2 * idx + 1], (1, fan_out),
                               minval=-bound, maxval=bound, dtype=jnp.float32)
        params[f"w{idx + 1}"] = w
        params[f"b{idx + 1}"] = b
    return params


def reference_forward(x, params):
    """Full-f32 reference (matches PyTorch module semantics)."""
    h1 = jnp.maximum(x @ params["w1"] + params["b1"], 0.0)
    h2 = jnp.maximum(h1 @ params["w2"] + params["b2"], 0.0)
    logits = h2 @ params["w3"] + params["b3"]
    return jax.nn.log_softmax(logits, axis=-1)


def reference_forward_bf16(x, kp):
    """Precision-matched reference (bf16 matmuls, f32 accum) for a tight check."""
    xb = x.astype(jnp.bfloat16)
    h1 = jnp.maximum(jnp.dot(xb, kp["w1"], preferred_element_type=jnp.float32)
                     + kp["b1"], 0.0)
    h2 = jnp.maximum(jnp.dot(h1.astype(jnp.bfloat16), kp["w2"],
                             preferred_element_type=jnp.float32) + kp["b2"], 0.0)
    logits = jnp.dot(h2.astype(jnp.bfloat16), kp["w3"],
                     preferred_element_type=jnp.float32) + kp["b3"]
    return jax.nn.log_softmax(logits, axis=-1)[:, :D_OUT]


if __name__ == "__main__":
    key = jax.random.PRNGKey(0)
    pkey, xkey = jax.random.split(key)
    params = init_params(pkey)

    # Small batch: single grid step.
    B = 8
    x = jax.random.normal(xkey, (B, D_IN), dtype=jnp.float32)
    out = jax.block_until_ready(fashion_network_forward(x, params))
    assert out.shape == (B, D_OUT)

    # Loose check vs the full-f32 PyTorch-equivalent reference.
    ref_f32 = reference_forward(x, params)
    assert jnp.allclose(out, ref_f32, atol=5e-2, rtol=5e-2), "mismatch vs f32 reference"

    # Tight check vs a precision-matched (bf16 matmul, f32 accum) reference.
    kp = prepare_kernel_params(params)
    ref_bf16 = reference_forward_bf16(x, kp)
    assert jnp.allclose(out, ref_bf16, atol=1e-3, rtol=1e-3), "mismatch vs bf16 reference"

    # Multi-step grid with a batch-pad remainder (B=24 -> TB=16, grid=(2,)).
    x2 = jax.random.normal(jax.random.PRNGKey(1), (24, D_IN), dtype=jnp.float32)
    out2 = jax.block_until_ready(fashion_network_forward(x2, params))
    assert out2.shape == (24, D_OUT)
    ref2 = reference_forward(x2, params)
    assert jnp.allclose(out2, ref2, atol=5e-2, rtol=5e-2), "mismatch vs f32 reference (B=24)"

    print("KERNEL_OK")
</pallas_src>

<mosaic_0001>
module attributes {stable_mosaic.version = 11 : i64} {
  func.func @_mlp_kernel(%arg0: i32, %arg1: memref<16x784xbf16, #tpu.memory_space<vmem>>, %arg2: memref<784x256xbf16, #tpu.memory_space<vmem>>, %arg3: memref<1x256xf32, #tpu.memory_space<vmem>>, %arg4: memref<256x128xbf16, #tpu.memory_space<vmem>>, %arg5: memref<1x128xf32, #tpu.memory_space<vmem>>, %arg6: memref<128x128xbf16, #tpu.memory_space<vmem>>, %arg7: memref<1x128xf32, #tpu.memory_space<vmem>>, %arg8: memref<16x128xf32, #tpu.memory_space<vmem>>) attributes {dimension_semantics = [#tpu.dimension_semantics<parallel>], iteration_bounds = array<i64: 1>, scalar_prefetch = 0 : i64, scratch_operands = 0 : i64, tpu.core_type = #tpu.core_type<tc>, window_params = [{transform_indices = @transform_0, window_bounds = array<i64: 16, 784>}, {pipeline_mode = #tpu.pipeline_mode<synchronous>, transform_indices = @transform_1, window_bounds = array<i64: 784, 256>}, {pipeline_mode = #tpu.pipeline_mode<synchronous>, transform_indices = @transform_2, window_bounds = array<i64: 1, 256>}, {pipeline_mode = #tpu.pipeline_mode<synchronous>, transform_indices = @transform_3, window_bounds = array<i64: 256, 128>}, {pipeline_mode = #tpu.pipeline_mode<synchronous>, transform_indices = @transform_4, window_bounds = array<i64: 1, 128>}, {pipeline_mode = #tpu.pipeline_mode<synchronous>, transform_indices = @transform_5, window_bounds = array<i64: 128, 128>}, {pipeline_mode = #tpu.pipeline_mode<synchronous>, transform_indices = @transform_6, window_bounds = array<i64: 1, 128>}, {transform_indices = @transform_7, window_bounds = array<i64: 16, 128>}]} {
    %c0 = arith.constant 0 : index
    %c0_0 = arith.constant 0 : index
    %0 = vector.load %arg1[%c0, %c0_0] : memref<16x784xbf16, #tpu.memory_space<vmem>>, vector<16x784xbf16>
    %c0_1 = arith.constant 0 : index
    %c0_2 = arith.constant 0 : index
    %1 = vector.load %arg2[%c0_1, %c0_2] : memref<784x256xbf16, #tpu.memory_space<vmem>>, vector<784x256xbf16>
    %cst = arith.constant dense<0.000000e+00> : vector<16x256xf32>
    %2 = tpu.matmul %0, %1, %cst {dimension_numbers = #tpu.dot_dimension_numbers<[1], [0], [0], [1], [0, 0, 1, 1], [], []>} : vector<16x784xbf16>, vector<784x256xbf16>, vector<16x256xf32> -> vector<16x256xf32>
    %c0_3 = arith.constant 0 : index
    %c0_4 = arith.constant 0 : index
    %3 = vector.load %arg3[%c0_3, %c0_4] : memref<1x256xf32, #tpu.memory_space<vmem>>, vector<1x256xf32>
    %4 = vector.broadcast %3 : vector<1x256xf32> to vector<16x256xf32>
    %5 = arith.addf %2, %4 : vector<16x256xf32>
    %cst_5 = arith.constant 0.000000e+00 : f32
    %6 = vector.broadcast %cst_5 : f32 to vector<16x256xf32>
    %7 = arith.maximumf %5, %6 : vector<16x256xf32>
    %8 = arith.truncf %7 : vector<16x256xf32> to vector<16x256xbf16>
    %c0_6 = arith.constant 0 : index
    %c0_7 = arith.constant 0 : index
    %9 = vector.load %arg4[%c0_6, %c0_7] : memref<256x128xbf16, #tpu.memory_space<vmem>>, vector<256x128xbf16>
    %cst_8 = arith.constant dense<0.000000e+00> : vector<16x128xf32>
    %10 = tpu.matmul %8, %9, %cst_8 {dimension_numbers = #tpu.dot_dimension_numbers<[1], [0], [0], [1], [0, 0, 1, 1], [], []>} : vector<16x256xbf16>, vector<256x128xbf16>, vector<16x128xf32> -> vector<16x128xf32>
    %c0_9 = arith.constant 0 : index
    %c0_10 = arith.constant 0 : index
    %11 = vector.load %arg5[%c0_9, %c0_10] : memref<1x128xf32, #tpu.memory_space<vmem>>, vector<1x128xf32>
    %12 = vector.broadcast %11 : vector<1x128xf32> to vector<16x128xf32>
    %13 = arith.addf %10, %12 : vector<16x128xf32>
    %cst_11 = arith.constant 0.000000e+00 : f32
    %14 = vector.broadcast %cst_11 : f32 to vector<16x128xf32>
    %15 = arith.maximumf %13, %14 : vector<16x128xf32>
    %16 = arith.truncf %15 : vector<16x128xf32> to vector<16x128xbf16>
    %c0_12 = arith.constant 0 : index
    %c0_13 = arith.constant 0 : index
    %17 = vector.load %arg6[%c0_12, %c0_13] : memref<128x128xbf16, #tpu.memory_space<vmem>>, vector<128x128xbf16>
    %cst_14 = arith.constant dense<0.000000e+00> : vector<16x128xf32>
    %18 = tpu.matmul %16, %17, %cst_14 {dimension_numbers = #tpu.dot_dimension_numbers<[1], [0], [0], [1], [0, 0, 1, 1], [], []>} : vector<16x128xbf16>, vector<128x128xbf16>, vector<16x128xf32> -> vector<16x128xf32>
    %c0_15 = arith.constant 0 : index
    %c0_16 = arith.constant 0 : index
    %19 = vector.load %arg7[%c0_15, %c0_16] : memref<1x128xf32, #tpu.memory_space<vmem>>, vector<1x128xf32>
    %20 = vector.broadcast %19 : vector<1x128xf32> to vector<16x128xf32>
    %21 = arith.addf %18, %20 : vector<16x128xf32>
    %cst_17 = arith.constant dense<0xFF800000> : vector<16xf32>
    %22 = vector.multi_reduction <maximumf>, %21, %cst_17 [1] : vector<16x128xf32> to vector<16xf32>
    %23 = vector.shape_cast %22 : vector<16xf32> to vector<16x1xf32>
    %24 = vector.broadcast %23 : vector<16x1xf32> to vector<16x128xf32>
    %25 = arith.subf %21, %24 : vector<16x128xf32>
    %26 = math.exp %25 : vector<16x128xf32>
    %cst_18 = arith.constant dense<0.000000e+00> : vector<16xf32>
    %27 = vector.multi_reduction <add>, %26, %cst_18 [1] : vector<16x128xf32> to vector<16xf32>
    %28 = vector.shape_cast %27 : vector<16xf32> to vector<16x1xf32>
    %29 = math.log %28 : vector<16x1xf32>
    %30 = vector.broadcast %29 : vector<16x1xf32> to vector<16x128xf32>
    %31 = arith.subf %25, %30 : vector<16x128xf32>
    %c0_19 = arith.constant 0 : index
    %c0_20 = arith.constant 0 : index
    %32 = vector.load %arg8[%c0_19, %c0_20] : memref<16x128xf32, #tpu.memory_space<vmem>>, vector<16x128xf32>
    tpu.vector_store %arg8[%c0_19, %c0_20], %31 {strides = array<i32>} : memref<16x128xf32, #tpu.memory_space<vmem>>, vector<16x128xf32>,
    return
  }
  func.func @transform_0(%arg0: i32) -> (i32, i32) {
    %c0_i32 = arith.constant 0 : i32
    %c0_i32_0 = arith.constant 0 : i32
    return %arg0, %c0_i32 : i32, i32
  }
  func.func @transform_1(%arg0: i32) -> (i32, i32) {
    %c0_i32 = arith.constant 0 : i32
    %c0_i32_0 = arith.constant 0 : i32
    %c0_i32_1 = arith.constant 0 : i32
    return %c0_i32, %c0_i32_0 : i32, i32
  }
  func.func @transform_2(%arg0: i32) -> (i32, i32) {
    %c0_i32 = arith.constant 0 : i32
    %c0_i32_0 = arith.constant 0 : i32
    %c0_i32_1 = arith.constant 0 : i32
    return %c0_i32, %c0_i32_0 : i32, i32
  }
  func.func @transform_3(%arg0: i32) -> (i32, i32) {
    %c0_i32 = arith.constant 0 : i32
    %c0_i32_0 = arith.constant 0 : i32
    %c0_i32_1 = arith.constant 0 : i32
    return %c0_i32, %c0_i32_0 : i32, i32
  }
  func.func @transform_4(%arg0: i32) -> (i32, i32) {
    %c0_i32 = arith.constant 0 : i32
    %c0_i32_0 = arith.constant 0 : i32
    %c0_i32_1 = arith.constant 0 : i32
    return %c0_i32, %c0_i32_0 : i32, i32
  }
  func.func @transform_5(%arg0: i32) -> (i32, i32) {
    %c0_i32 = arith.constant 0 : i32
    %c0_i32_0 = arith.constant 0 : i32
    %c0_i32_1 = arith.constant 0 : i32
    return %c0_i32, %c0_i32_0 : i32, i32
  }
  func.func @transform_6(%arg0: i32) -> (i32, i32) {
    %c0_i32 = arith.constant 0 : i32
    %c0_i32_0 = arith.constant 0 : i32
    %c0_i32_1 = arith.constant 0 : i32
    return %c0_i32, %c0_i32_0 : i32, i32
  }
  func.func @transform_7(%arg0: i32) -> (i32, i32) {
    %c0_i32 = arith.constant 0 : i32
    %c0_i32_0 = arith.constant 0 : i32
    return %arg0, %c0_i32 : i32, i32
  }
}

</mosaic_0001>

<llo_original>
// kernel: tpu_custom_call.1
$region0: #{tpu_custom_call.1}
  #allocation0 [shape = 'u32[]', space=smem, size = 0x4, offset = 0x4, fixed_abs, tag = 'smem constant byte address 0x4 - core index']
  #allocation1 [shape = 'u32[144,128]{1,0:T(1,128)}', space=vmem, size = 0x12000, scoped, tag = 'internal scratch']
  %s0 = inlined_call_operand.hbm [shape: bf16[16,784], index: 0, kind: input, shape index: {}]
  %s1 = inlined_call_operand.hbm [shape: bf16[784,256], index: 1, kind: input, shape index: {}]
  %s2 = inlined_call_operand.vmem [shape: f32[1,256], index: 2, kind: input, shape index: {}]
  %s3 = inlined_call_operand.hbm [shape: bf16[256,128], index: 3, kind: input, shape index: {}]
  %s4 = inlined_call_operand.vmem [shape: f32[1,128], index: 4, kind: input, shape index: {}]
  %s5 = inlined_call_operand.hbm [shape: bf16[128,128], index: 5, kind: input, shape index: {}]
  %s6 = inlined_call_operand.vmem [shape: f32[1,128], index: 6, kind: input, shape index: {}]
  %s7 = inlined_call_operand.hbm [shape: f32[16,128], index: 7, kind: output, shape index: {}]
  %s8 = sld [smem:[#allocation0]]
  $region54: #{tpu_custom_call.1} parent=0
    _
  %s10 = ssub.s32 1, %s8
  %s11 = scalar_select 0, %s10, %s8
  $region1: #{tpu_custom_call.1} parent=0
    #allocation2 [shape = 'u8[28672]{0}', space=vmem, size = 0x7000, scoped, tag = 'input window, operand 0, single buffered']
    #allocation3 [shape = 's32[1]{0}', space=sflag, size = 0x4, scoped, tag = 'scoped memory for tpu_custom_call.1']
    #allocation4 [shape = 's32[1]{0}', space=sflag, size = 0x4, scoped, tag = 'scoped memory for tpu_custom_call.1']
    #allocation5 [shape = 'u8[401408]{0}', space=vmem, size = 0x62000, scoped, tag = 'input window, operand 1, single buffered']
    #allocation6 [shape = 's32[1]{0}', space=sflag, size = 0x4, scoped, tag = 'scoped memory for tpu_custom_call.1']
    #allocation7 [shape = 'u8[65536]{0}', space=vmem, size = 0x10000, scoped, tag = 'input window, operand 3, single buffered']
    #allocation8 [shape = 'u8[32768]{0}', space=vmem, size = 0x8000, scoped, tag = 'input window, operand 5, single buffered']
    #allocation9 [shape = 's32[1]{0}', space=sflag, size = 0x4, scoped, tag = 'scoped memory for tpu_custom_call.1']
    #allocation10 [shape = 'u8[8192]{0}', space=vmem, size = 0x2000, scoped, tag = 'output window, operand 0, single buffered']
    %12 = vsyncpa [#allocation3], 0
    %13 = vsyncpa [#allocation6], 0
    %14 = vsyncpa [#allocation9], 0
    %15 = vsyncpa [#allocation4], 0
    // Predicated region
    $region2: #{tpu_custom_call.1} parent=1 // pred_check
      _
    $region3: #{tpu_custom_call.1} parent=1 // pred_check_branch
      %17 = sbr.rel (0) target = $region5
    $region4: #{tpu_custom_call.1} parent=1 // pred_region
      %s19 = ssub.s32 896, 896
      %20 = vsyncadd [#allocation3], %s19
      %s21 = sshll.u32 [#allocation2], 4
      %s22 = int_to_ptr.vmem [resolvable:$true] %s21
      %27 = dma.hbm_to_vmem [thread:$0]  %s0, 896, %s22, [#allocation3], 448, 448, 28
    $region5: #{tpu_custom_call.1} parent=1 // pred_fallthru
      _
    // Predicated region
    $region6: #{tpu_custom_call.1} parent=1 // pred_check
      _
    $region7: #{tpu_custom_call.1} parent=1 // pred_check_branch
      %29 = sbr.rel (0) target = $region9
    $region8: #{tpu_custom_call.1} parent=1 // pred_region
      %s31 = ssub.s32 12544, 12544
      %32 = vsyncadd [#allocation6], %s31
      %s33 = sshll.u32 [#allocation5], 4
      %s34 = int_to_ptr.vmem [resolvable:$true] %s33
      %39 = dma.hbm_to_vmem [thread:$0]  %s1, 12544, %s34, [#allocation6], 128, 128, 8
    $region9: #{tpu_custom_call.1} parent=1 // pred_fallthru
      _
    // Predicated region
    $region10: #{tpu_custom_call.1} parent=1 // pred_check
      _
    $region11: #{tpu_custom_call.1} parent=1 // pred_check_branch
      %41 = sbr.rel (0) target = $region13
    $region12: #{tpu_custom_call.1} parent=1 // pred_region
      _
    $region13: #{tpu_custom_call.1} parent=1 // pred_fallthru
      _
    // Predicated region
    $region14: #{tpu_custom_call.1} parent=1 // pred_check
      _
    $region15: #{tpu_custom_call.1} parent=1 // pred_check_branch
      %43 = sbr.rel (0) target = $region17
    $region16: #{tpu_custom_call.1} parent=1 // pred_region
      %s45 = ssub.s32 2048, 2048
      %46 = vsyncadd [#allocation6], %s45
      %s47 = sshll.u32 [#allocation7], 4
      %s48 = int_to_ptr.vmem [resolvable:$true] %s47
      %53 = dma.hbm_to_vmem [thread:$0]  %s3, 2048, %s48, [#allocation6], 64, 64, 4
    $region17: #{tpu_custom_call.1} parent=1 // pred_fallthru
      _
    // Predicated region
    $region18: #{tpu_custom_call.1} parent=1 // pred_check
      _
    $region19: #{tpu_custom_call.1} parent=1 // pred_check_branch
      %55 = sbr.rel (0) target = $region21
    $region20: #{tpu_custom_call.1} parent=1 // pred_region
      _
    $region21: #{tpu_custom_call.1} parent=1 // pred_fallthru
      _
    // Predicated region
    $region22: #{tpu_custom_call.1} parent=1 // pred_check
      _
    $region23: #{tpu_custom_call.1} parent=1 // pred_check_branch
      %57 = sbr.rel (0) target = $region25
    $region24: #{tpu_custom_call.1} parent=1 // pred_region
      %s59 = ssub.s32 1024, 1024
      %60 = vsyncadd [#allocation9], %s59
      %s61 = sshll.u32 [#allocation8], 4
      %s62 = int_to_ptr.vmem [resolvable:$true] %s61
      %67 = dma.hbm_to_vmem [thread:$0]  %s5, 1024, %s62, [#allocation9], 64, 64, 4
    $region25: #{tpu_custom_call.1} parent=1 // pred_fallthru
      _
    // Predicated region
    $region26: #{tpu_custom_call.1} parent=1 // pred_check
      _
    $region27: #{tpu_custom_call.1} parent=1 // pred_check_branch
      %69 = sbr.rel (0) target = $region29
    $region28: #{tpu_custom_call.1} parent=1 // pred_region
      _
    $region29: #{tpu_custom_call.1} parent=1 // pred_fallthru
      _
    // Predicated region
    $region30: #{tpu_custom_call.1} parent=1 // pred_check
      _
    $region31: #{tpu_custom_call.1} parent=1 // pred_check_branch
      %71 = sbr.rel (0) target = $region33
    $region32: #{tpu_custom_call.1} parent=1 // pred_region
      %72 = dma.done [#allocation3], 896
    $region33: #{tpu_custom_call.1} parent=1 // pred_fallthru
      _
    // Predicated region
    $region34: #{tpu_custom_call.1} parent=1 // pred_check
      _
    $region35: #{tpu_custom_call.1} parent=1 // pred_check_branch
      %74 = sbr.rel (0) target = $region37
    $region36: #{tpu_custom_call.1} parent=1 // pred_region
      %75 = dma.done [#allocation6], 12544
    $region37: #{tpu_custom_call.1} parent=1 // pred_fallthru
      _
    // Predicated region
    $region38: #{tpu_custom_call.1} parent=1 // pred_check
      _
    $region39: #{tpu_custom_call.1} parent=1 // pred_check_branch
      %77 = sbr.rel (0) target = $region41
    $region40: #{tpu_custom_call.1} parent=1 // pred_region
      %78 = dma.done [#allocation6], 2048
    $region41: #{tpu_custom_call.1} parent=1 // pred_fallthru
      _
    // Predicated region
    $region42: #{tpu_custom_call.1} parent=1 // pred_check
      _
    $region43: #{tpu_custom_call.1} parent=1 // pred_check_branch
      %80 = sbr.rel (0) target = $region45
    $region44: #{tpu_custom_call.1} parent=1 // pred_region
      %81 = dma.done [#allocation9], 1024
    $region45: #{tpu_custom_call.1} parent=1 // pred_fallthru
      _
    %v83 = vld [vmem:[#allocation2] sm:$0xff]
    %v84 = vld [vmem:[#allocation2 + $0x8] sm:$0xff]
    %v85 = vld [vmem:[#allocation2 + $0x10] sm:$0xff]
    %v86 = vld [vmem:[#allocation2 + $0x18] sm:$0xf]
    %v87 = vld [vmem:[#allocation2 + $0x1c] sm:$0xff]
    %v88 = vld [vmem:[#allocation2 + $0x24] sm:$0xff]
    %v89 = vld [vmem:[#allocation2 + $0x2c] sm:$0xff]
    %v90 = vld [vmem:[#allocation2 + $0x34] sm:$0xf]
    %v91 = vld [vmem:[#allocation5] sm:$0xff]
    %v92 = vld [vmem:[#allocation5 + $0x8] sm:$0xff]
    %v93 = vld [vmem:[#allocation5 + $0x10] sm:$0xff]
    %v94 = vld [vmem:[#allocation5 + $0x18] sm:$0xff]
    %v95 = vld [vmem:[#allocation5 + $0x20] sm:$0xff]
    %v96 = vld [vmem:[#allocation5 + $0x28] sm:$0xff]
    %v97 = vld [vmem:[#allocation5 + $0x30] sm:$0xff]
    %v98 = vld [vmem:[#allocation5 + $0x38] sm:$0xff]
    %v99 = vld [vmem:[#allocation5 + $0x40] sm:$0xff]
    %v100 = vld [vmem:[#allocation5 + $0x48] sm:$0xff]
    %v101 = vld [vmem:[#allocation5 + $0x50] sm:$0xff]
    %v102 = vld [vmem:[#allocation5 + $0x58] sm:$0xff]
    %v103 = vld [vmem:[#allocation5 + $0x60] sm:$0xff]
    %v104 = vld [vmem:[#allocation5 + $0x68] sm:$0xff]
    %v105 = vld [vmem:[#allocation5 + $0x70] sm:$0xff]
    %v106 = vld [vmem:[#allocation5 + $0x78] sm:$0xff]
    %v107 = vld [vmem:[#allocation5 + $0x80] sm:$0xff]
    %v108 = vld [vmem:[#allocation5 + $0x88] sm:$0xff]
    %v109 = vld [vmem:[#allocation5 + $0x90] sm:$0xff]
    %v110 = vld [vmem:[#allocation5 + $0x98] sm:$0xff]
    %v111 = vld [vmem:[#allocation5 + $0xa0] sm:$0xff]
    %v112 = vld [vmem:[#allocation5 + $0xa8] sm:$0xff]
    %v113 = vld [vmem:[#allocation5 + $0xb0] sm:$0xff]
    %v114 = vld [vmem:[#allocation5 + $0xb8] sm:$0xff]
    %v115 = vld [vmem:[#allocation5 + $0xc0] sm:$0xff]
    %v116 = vld [vmem:[#allocation5 + $0xc8] sm:$0xff]
    %v117 = vld [vmem:[#allocation5 + $0xd0] sm:$0xff]
    %v118 = vld [vmem:[#allocation5 + $0xd8] sm:$0xff]
    %v119 = vld [vmem:[#allocation5 + $0xe0] sm:$0xff]
    %v120 = vld [vmem:[#allocation5 + $0xe8] sm:$0xff]
    %v121 = vld [vmem:[#allocation5 + $0xf0] sm:$0xff]
    %v122 = vld [vmem:[#allocation5 + $0xf8] sm:$0xff]
    %v123 = vld [vmem:[#allocation5 + $0x100] sm:$0xff]
    %v124 = vld [vmem:[#allocation5 + $0x108] sm:$0xff]
    %v125 = vld [vmem:[#allocation5 + $0x110] sm:$0xff]
    %v126 = vld [vmem:[#allocation5 + $0x118] sm:$0xff]
    %v127 = vld [vmem:[#allocation5 + $0x120] sm:$0xff]
    %v128 = vld [vmem:[#allocation5 + $0x128] sm:$0xff]
    %v129 = vld [vmem:[#allocation5 + $0x130] sm:$0xff]
    %v130 = vld [vmem:[#allocation5 + $0x138] sm:$0xff]
    %v131 = vld [vmem:[#allocation5 + $0x140] sm:$0xff]
    %v132 = vld [vmem:[#allocation5 + $0x148] sm:$0xff]
    %v133 = vld [vmem:[#allocation5 + $0x150] sm:$0xff]
    %v134 = vld [vmem:[#allocation5 + $0x158] sm:$0xff]
    %v135 = vld [vmem:[#allocation5 + $0x160] sm:$0xff]
    %v136 = vld [vmem:[#allocation5 + $0x168] sm:$0xff]
    %v137 = vld [vmem:[#allocation5 + $0x170] sm:$0xff]
    %v138 = vld [vmem:[#allocation5 + $0x178] sm:$0xff]
    %v139 = vld [vmem:[#allocation5 + $0x180] sm:$0xff]
    %v140 = vld [vmem:[#allocation5 + $0x188] sm:$0xff]
    %v141 = vld [vmem:[#allocation5 + $0x190] sm:$0xff]
    %v142 = vld [vmem:[#allocation5 + $0x198] sm:$0xff]
    %v143 = vld [vmem:[#allocation5 + $0x1a0] sm:$0xff]
    %v144 = vld [vmem:[#allocation5 + $0x1a8] sm:$0xff]
    %v145 = vld [vmem:[#allocation5 + $0x1b0] sm:$0xff]
    %v146 = vld [vmem:[#allocation5 + $0x1b8] sm:$0xff]
    %v147 = vld [vmem:[#allocation5 + $0x1c0] sm:$0xff]
    %v148 = vld [vmem:[#allocation5 + $0x1c8] sm:$0xff]
    %v149 = vld [vmem:[#allocation5 + $0x1d0] sm:$0xff]
    %v150 = vld [vmem:[#allocation5 + $0x1d8] sm:$0xff]
    %v151 = vld [vmem:[#allocation5 + $0x1e0] sm:$0xff]
    %v152 = vld [vmem:[#allocation5 + $0x1e8] sm:$0xff]
    %v153 = vld [vmem:[#allocation5 + $0x1f0] sm:$0xff]
    %v154 = vld [vmem:[#allocation5 + $0x1f8] sm:$0xff]
    %v155 = vld [vmem:[#allocation5 + $0x200] sm:$0xff]
    %v156 = vld [vmem:[#allocation5 + $0x208] sm:$0xff]
    %v157 = vld [vmem:[#allocation5 + $0x210] sm:$0xff]
    %v158 = vld [vmem:[#allocation5 + $0x218] sm:$0xff]
    %v159 = vld [vmem:[#allocation5 + $0x220] sm:$0xff]
    %v160 = vld [vmem:[#allocation5 + $0x228] sm:$0xff]
    %v161 = vld [vmem:[#allocation5 + $0x230] sm:$0xff]
    %v162 = vld [vmem:[#allocation5 + $0x238] sm:$0xff]
    %v163 = vld [vmem:[#allocation5 + $0x240] sm:$0xff]
    %v164 = vld [vmem:[#allocation5 + $0x248] sm:$0xff]
    %v165 = vld [vmem:[#allocation5 + $0x250] sm:$0xff]
    %v166 = vld [vmem:[#allocation5 + $0x258] sm:$0xff]
    %v167 = vld [vmem:[#allocation5 + $0x260] sm:$0xff]
    %v168 = vld [vmem:[#allocation5 + $0x268] sm:$0xff]
    %v169 = vld [vmem:[#allocation5 + $0x270] sm:$0xff]
    %v170 = vld [vmem:[#allocation5 + $0x278] sm:$0xff]
    %v171 = vld [vmem:[#allocation5 + $0x280] sm:$0xff]
    %v172 = vld [vmem:[#allocation5 + $0x288] sm:$0xff]
    %v173 = vld [vmem:[#allocation5 + $0x290] sm:$0xff]
    %v174 = vld [vmem:[#allocation5 + $0x298] sm:$0xff]
    %v175 = vld [vmem:[#allocation5 + $0x2a0] sm:$0xff]
    %v176 = vld [vmem:[#allocation5 + $0x2a8] sm:$0xff]
    %v177 = vld [vmem:[#allocation5 + $0x2b0] sm:$0xff]
    %v178 = vld [vmem:[#allocation5 + $0x2b8] sm:$0xff]
    %v179 = vld [vmem:[#allocation5 + $0x2c0] sm:$0xff]
    %v180 = vld [vmem:[#allocation5 + $0x2c8] sm:$0xff]
    %v181 = vld [vmem:[#allocation5 + $0x2d0] sm:$0xff]
    %v182 = vld [vmem:[#allocation5 + $0x2d8] sm:$0xff]
    %v183 = vld [vmem:[#allocation5 + $0x2e0] sm:$0xff]
    %v184 = vld [vmem:[#allocation5 + $0x2e8] sm:$0xff]
    %v185 = vld [vmem:[#allocation5 + $0x2f0] sm:$0xff]
    %v186 = vld [vmem:[#allocation5 + $0x2f8] sm:$0xff]
    %v187 = vld [vmem:[#allocation5 + $0x300] sm:$0xff]
    %v188 = vld [vmem:[#allocation5 + $0x308] sm:$0xff]
    %v189 = vld [vmem:[%s2] sm:$0x3]
    %v191 = vlaneseq
    %v192 = vshrl.u32 %v191, 7
    %v193 = vsub.s32 0, %v192
    %v194 = vrot.slane %v189, %v193
    %v195 = vlaneseq
    %v196 = vshrl.u32 %v195, 7
    %v197 = vsub.s32 1, %v196
    %v198 = vrot.slane %v189, %v197
    %v209 = vunpack.c.l.b16 %v83
    %v210 = vunpack.c.h.b16 %v83
    %v211 = vunpack.c.l.b16 %v84
    %v212 = vunpack.c.h.b16 %v84
    %v213 = vunpack.c.l.b16 %v85
    %v214 = vunpack.c.h.b16 %v85
    %v215 = vunpack.c.l.b16 %v86
    %v216 = vunpack.c.l.b16 %v87
    %v217 = vunpack.c.h.b16 %v87
    %v218 = vunpack.c.l.b16 %v88
    %v219 = vunpack.c.h.b16 %v88
    %v220 = vunpack.c.l.b16 %v89
    %v221 = vunpack.c.h.b16 %v89
    %v222 = vunpack.c.l.b16 %v90
    %v223 = vpack.c.b16 %v216, %v209
    %v224 = vpack.c.b16 %v217, %v210
    %v225 = vpack.c.b16 %v218, %v211
    %v226 = vpack.c.b16 %v219, %v212
    %v227 = vpack.c.b16 %v220, %v213
    %v228 = vpack.c.b16 %v221, %v214
    %v229 = vpack.c.b16 %v222, %v215
    %v334 = vunpack.c.l.b16 %v91
    %v335 = vunpack.c.h.b16 %v91
    %v336 = vunpack.c.l.b16 %v92
    %v337 = vunpack.c.h.b16 %v92
    %v338 = vunpack.c.l.b16 %v93
    %v339 = vunpack.c.h.b16 %v93
    %v340 = vunpack.c.l.b16 %v94
    %v341 = vunpack.c.h.b16 %v94
    %v342 = vunpack.c.l.b16 %v95
    %v343 = vunpack.c.h.b16 %v95
    %v344 = vunpack.c.l.b16 %v96
    %v345 = vunpack.c.h.b16 %v96
    %v346 = vunpack.c.l.b16 %v97
    %v347 = vunpack.c.h.b16 %v97
    %v348 = vunpack.c.l.b16 %v98
    %v349 = vunpack.c.h.b16 %v98
    %v350 = vunpack.c.l.b16 %v99
    %v351 = vunpack.c.h.b16 %v99
    %v352 = vunpack.c.l.b16 %v100
    %v353 = vunpack.c.h.b16 %v100
    %v354 = vunpack.c.l.b16 %v101
    %v355 = vunpack.c.h.b16 %v101
    %v356 = vunpack.c.l.b16 %v102
    %v357 = vunpack.c.h.b16 %v102
    %v358 = vunpack.c.l.b16 %v103
    %v359 = vunpack.c.h.b16 %v103
    %v360 = vunpack.c.l.b16 %v104
    %v361 = vunpack.c.h.b16 %v104
    %v362 = vunpack.c.l.b16 %v105
    %v363 = vunpack.c.h.b16 %v105
    %v364 = vunpack.c.l.b16 %v106
    %v365 = vunpack.c.h.b16 %v106
    %v366 = vunpack.c.l.b16 %v107
    %v367 = vunpack.c.h.b16 %v107
    %v368 = vunpack.c.l.b16 %v108
    %v369 = vunpack.c.h.b16 %v108
    %v370 = vunpack.c.l.b16 %v109
    %v371 = vunpack.c.h.b16 %v109
    %v372 = vunpack.c.l.b16 %v110
    %v373 = vunpack.c.h.b16 %v110
    %v374 = vunpack.c.l.b16 %v111
    %v375 = vunpack.c.h.b16 %v111
    %v376 = vunpack.c.l.b16 %v112
    %v377 = vunpack.c.h.b16 %v112
    %v378 = vunpack.c.l.b16 %v113
    %v379 = vunpack.c.h.b16 %v113
    %v380 = vunpack.c.l.b16 %v114
    %v381 = vunpack.c.h.b16 %v114
    %v382 = vunpack.c.l.b16 %v115
    %v383 = vunpack.c.h.b16 %v115
    %v384 = vunpack.c.l.b16 %v116
    %v385 = vunpack.c.h.b16 %v116
    %v386 = vunpack.c.l.b16 %v117
    %v387 = vunpack.c.h.b16 %v117
    %v388 = vunpack.c.l.b16 %v118
    %v389 = vunpack.c.h.b16 %v118
    %v390 = vunpack.c.l.b16 %v119
    %v391 = vunpack.c.h.b16 %v119
    %v392 = vunpack.c.l.b16 %v120
    %v393 = vunpack.c.h.b16 %v120
    %v394 = vunpack.c.l.b16 %v121
    %v395 = vunpack.c.h.b16 %v121
    %v396 = vunpack.c.l.b16 %v122
    %v397 = vunpack.c.h.b16 %v122
    %v398 = vunpack.c.l.b16 %v123
    %v399 = vunpack.c.h.b16 %v123
    %v400 = vunpack.c.l.b16 %v124
    %v401 = vunpack.c.h.b16 %v124
    %v402 = vunpack.c.l.b16 %v125
    %v403 = vunpack.c.h.b16 %v125
    %v404 = vunpack.c.l.b16 %v126
    %v405 = vunpack.c.h.b16 %v126
    %v406 = vunpack.c.l.b16 %v127
    %v407 = vunpack.c.h.b16 %v127
    %v408 = vunpack.c.l.b16 %v128
    %v409 = vunpack.c.h.b16 %v128
    %v410 = vunpack.c.l.b16 %v129
    %v411 = vunpack.c.h.b16 %v129
    %v412 = vunpack.c.l.b16 %v130
    %v413 = vunpack.c.h.b16 %v130
    %v414 = vunpack.c.l.b16 %v131
    %v415 = vunpack.c.h.b16 %v131
    %v416 = vunpack.c.l.b16 %v132
    %v417 = vunpack.c.h.b16 %v132
    %v418 = vunpack.c.l.b16 %v133
    %v419 = vunpack.c.h.b16 %v133
    %v420 = vunpack.c.l.b16 %v134
    %v421 = vunpack.c.h.b16 %v134
    %v422 = vunpack.c.l.b16 %v135
    %v423 = vunpack.c.h.b16 %v135
    %v424 = vunpack.c.l.b16 %v136
    %v425 = vunpack.c.h.b16 %v136
    %v426 = vunpack.c.l.b16 %v137
    %v427 = vunpack.c.h.b16 %v137
    %v428 = vunpack.c.l.b16 %v138
    %v429 = vunpack.c.h.b16 %v138
    %v430 = vunpack.c.l.b16 %v139
    %v431 = vunpack.c.h.b16 %v139
    %v432 = vunpack.c.l.b16 %v140
    %v433 = vunpack.c.h.b16 %v140
    %v434 = vunpack.c.l.b16 %v141
    %v435 = vunpack.c.h.b16 %v141
    %v436 = vunpack.c.l.b16 %v142
    %v437 = vunpack.c.h.b16 %v142
    %v438 = vunpack.c.l.b16 %v143
    %v439 = vunpack.c.h.b16 %v143
    %v440 = vunpack.c.l.b16 %v144
    %v441 = vunpack.c.h.b16 %v144
    %v442 = vunpack.c.l.b16 %v145
    %v443 = vunpack.c.h.b16 %v145
    %v444 = vunpack.c.l.b16 %v146
    %v445 = vunpack.c.h.b16 %v146
    %v446 = vunpack.c.l.b16 %v147
    %v447 = vunpack.c.h.b16 %v147
    %v448 = vunpack.c.l.b16 %v148
    %v449 = vunpack.c.h.b16 %v148
    %v450 = vunpack.c.l.b16 %v149
    %v451 = vunpack.c.h.b16 %v149
    %v452 = vunpack.c.l.b16 %v150
    %v453 = vunpack.c.h.b16 %v150
    %v454 = vunpack.c.l.b16 %v151
    %v455 = vunpack.c.h.b16 %v151
    %v456 = vunpack.c.l.b16 %v152
    %v457 = vunpack.c.h.b16 %v152
    %v458 = vunpack.c.l.b16 %v153
    %v459 = vunpack.c.h.b16 %v153
    %v460 = vunpack.c.l.b16 %v154
    %v461 = vunpack.c.h.b16 %v154
    %v462 = vunpack.c.l.b16 %v155
    %v463 = vunpack.c.h.b16 %v155
    %v464 = vunpack.c.l.b16 %v156
    %v465 = vunpack.c.h.b16 %v156
    %v466 = vunpack.c.l.b16 %v157
    %v467 = vunpack.c.h.b16 %v157
    %v468 = vunpack.c.l.b16 %v158
    %v469 = vunpack.c.h.b16 %v158
    %v470 = vunpack.c.l.b16 %v159
    %v471 = vunpack.c.h.b16 %v159
    %v472 = vunpack.c.l.b16 %v160
    %v473 = vunpack.c.h.b16 %v160
    %v474 = vunpack.c.l.b16 %v161
    %v475 = vunpack.c.h.b16 %v161
    %v476 = vunpack.c.l.b16 %v162
    %v477 = vunpack.c.h.b16 %v162
    %v478 = vunpack.c.l.b16 %v163
    %v479 = vunpack.c.h.b16 %v163
    %v480 = vunpack.c.l.b16 %v164
    %v481 = vunpack.c.h.b16 %v164
    %v482 = vunpack.c.l.b16 %v165
    %v483 = vunpack.c.h.b16 %v165
    %v484 = vunpack.c.l.b16 %v166
    %v485 = vunpack.c.h.b16 %v166
    %v486 = vunpack.c.l.b16 %v167
    %v487 = vunpack.c.h.b16 %v167
    %v488 = vunpack.c.l.b16 %v168
    %v489 = vunpack.c.h.b16 %v168
    %v490 = vunpack.c.l.b16 %v169
    %v491 = vunpack.c.h.b16 %v169
    %v492 = vunpack.c.l.b16 %v170
    %v493 = vunpack.c.h.b16 %v170
    %v494 = vunpack.c.l.b16 %v171
    %v495 = vunpack.c.h.b16 %v171
    %v496 = vunpack.c.l.b16 %v172
    %v497 = vunpack.c.h.b16 %v172
    %v498 = vunpack.c.l.b16 %v173
    %v499 = vunpack.c.h.b16 %v173
    %v500 = vunpack.c.l.b16 %v174
    %v501 = vunpack.c.h.b16 %v174
    %v502 = vunpack.c.l.b16 %v175
    %v503 = vunpack.c.h.b16 %v175
    %v504 = vunpack.c.l.b16 %v176
    %v505 = vunpack.c.h.b16 %v176
    %v506 = vunpack.c.l.b16 %v177
    %v507 = vunpack.c.h.b16 %v177
    %v508 = vunpack.c.l.b16 %v178
    %v509 = vunpack.c.h.b16 %v178
    %v510 = vunpack.c.l.b16 %v179
    %v511 = vunpack.c.h.b16 %v179
    %v512 = vunpack.c.l.b16 %v180
    %v513 = vunpack.c.h.b16 %v180
    %v514 = vunpack.c.l.b16 %v181
    %v515 = vunpack.c.h.b16 %v181
    %v516 = vunpack.c.l.b16 %v182
    %v517 = vunpack.c.h.b16 %v182
    %v518 = vunpack.c.l.b16 %v183
    %v519 = vunpack.c.h.b16 %v183
    %v520 = vunpack.c.l.b16 %v184
    %v521 = vunpack.c.h.b16 %v184
    %v522 = vunpack.c.l.b16 %v185
    %v523 = vunpack.c.h.b16 %v185
    %v524 = vunpack.c.l.b16 %v186
    %v525 = vunpack.c.h.b16 %v186
    %v526 = vunpack.c.l.b16 %v187
    %v527 = vunpack.c.h.b16 %v187
    %v528 = vunpack.c.l.b16 %v188
    %v529 = vunpack.c.h.b16 %v188
    %v530 = vpack.c.b16 %v336, %v334
    %v531 = vpack.c.b16 %v337, %v335
    %v532 = vpack.c.b16 %v340, %v338
    %v533 = vpack.c.b16 %v341, %v339
    %v534 = vpack.c.b16 %v344, %v342
    %v535 = vpack.c.b16 %v345, %v343
    %v536 = vpack.c.b16 %v348, %v346
    %v537 = vpack.c.b16 %v349, %v347
    %v538 = vpack.c.b16 %v352, %v350
    %v539 = vpack.c.b16 %v353, %v351
    %v540 = vpack.c.b16 %v356, %v354
    %v541 = vpack.c.b16 %v357, %v355
    %v542 = vpack.c.b16 %v360, %v358
    %v543 = vpack.c.b16 %v361, %v359
    %v544 = vpack.c.b16 %v364, %v362
    %v545 = vpack.c.b16 %v365, %v363
    %v546 = vpack.c.b16 %v368, %v366
    %v547 = vpack.c.b16 %v369, %v367
    %v548 = vpack.c.b16 %v372, %v370
    %v549 = vpack.c.b16 %v373, %v371
    %v550 = vpack.c.b16 %v376, %v374
    %v551 = vpack.c.b16 %v377, %v375
    %v552 = vpack.c.b16 %v380, %v378
    %v553 = vpack.c.b16 %v381, %v379
    %v554 = vpack.c.b16 %v384, %v382
    %v555 = vpack.c.b16 %v385, %v383
    %v556 = vpack.c.b16 %v388, %v386
    %v557 = vpack.c.b16 %v389, %v387
    %v558 = vpack.c.b16 %v392, %v390
    %v559 = vpack.c.b16 %v393, %v391
    %v560 = vpack.c.b16 %v396, %v394
    %v561 = vpack.c.b16 %v397, %v395
    %v562 = vpack.c.b16 %v400, %v398
    %v563 = vpack.c.b16 %v401, %v399
    %v564 = vpack.c.b16 %v404, %v402
    %v565 = vpack.c.b16 %v405, %v403
    %v566 = vpack.c.b16 %v408, %v406
    %v567 = vpack.c.b16 %v409, %v407
    %v568 = vpack.c.b16 %v412, %v410
    %v569 = vpack.c.b16 %v413, %v411
    %v570 = vpack.c.b16 %v416, %v414
    %v571 = vpack.c.b16 %v417, %v415
    %v572 = vpack.c.b16 %v420, %v418
    %v573 = vpack.c.b16 %v421, %v419
    %v574 = vpack.c.b16 %v424, %v422
    %v575 = vpack.c.b16 %v425, %v423
    %v576 = vpack.c.b16 %v428, %v426
    %v577 = vpack.c.b16 %v429, %v427
    %v578 = vpack.c.b16 %v432, %v430
    %v579 = vpack.c.b16 %v433, %v431
    %v580 = vpack.c.b16 %v436, %v434
    %v581 = vpack.c.b16 %v437, %v435
    %v582 = vpack.c.b16 %v440, %v438
    %v583 = vpack.c.b16 %v441, %v439
    %v584 = vpack.c.b16 %v444, %v442
    %v585 = vpack.c.b16 %v445, %v443
    %v586 = vpack.c.b16 %v448, %v446
    %v587 = vpack.c.b16 %v449, %v447
    %v588 = vpack.c.b16 %v452, %v450
    %v589 = vpack.c.b16 %v453, %v451
    %v590 = vpack.c.b16 %v456, %v454
    %v591 = vpack.c.b16 %v457, %v455
    %v592 = vpack.c.b16 %v460, %v458
    %v593 = vpack.c.b16 %v461, %v459
    %v594 = vpack.c.b16 %v464, %v462
    %v595 = vpack.c.b16 %v465, %v463
    %v596 = vpack.c.b16 %v468, %v466
    %v597 = vpack.c.b16 %v469, %v467
    %v598 = vpack.c.b16 %v472, %v470
    %v599 = vpack.c.b16 %v473, %v471
    %v600 = vpack.c.b16 %v476, %v474
    %v601 = vpack.c.b16 %v477, %v475
    %v602 = vpack.c.b16 %v480, %v478
    %v603 = vpack.c.b16 %v481, %v479
    %v604 = vpack.c.b16 %v484, %v482
    %v605 = vpack.c.b16 %v485, %v483
    %v606 = vpack.c.b16 %v488, %v486
    %v607 = vpack.c.b16 %v489, %v487
    %v608 = vpack.c.b16 %v492, %v490
    %v609 = vpack.c.b16 %v493, %v491
    %v610 = vpack.c.b16 %v496, %v494
    %v611 = vpack.c.b16 %v497, %v495
    %v612 = vpack.c.b16 %v500, %v498
    %v613 = vpack.c.b16 %v501, %v499
    %v614 = vpack.c.b16 %v504, %v502
    %v615 = vpack.c.b16 %v505, %v503
    %v616 = vpack.c.b16 %v508, %v506
    %v617 = vpack.c.b16 %v509, %v507
    %v618 = vpack.c.b16 %v512, %v510
    %v619 = vpack.c.b16 %v513, %v511
    %v620 = vpack.c.b16 %v516, %v514
    %v621 = vpack.c.b16 %v517, %v515
    %v622 = vpack.c.b16 %v520, %v518
    %v623 = vpack.c.b16 %v521, %v519
    %v624 = vpack.c.b16 %v524, %v522
    %v625 = vpack.c.b16 %v525, %v523
    %v626 = vpack.c.b16 %v528, %v526
    %v627 = vpack.c.b16 %v529, %v527
    %vm726 = vcmask 130048
    %v728 = vsel %vm726, %v229, 0
    %730 = vmatprep.subr.bf16.mxu0 %v531
    %731 = vmatpush1.bf16.msra.mxu0 %v530
    %732 = vmatprep.subr.bf16.mxu0 %v533
    %733 = vmatpush1.bf16.msra.mxu0 %v532
    %734 = vmatprep.subr.bf16.mxu0 %v535
    %735 = vmatpush1.bf16.msra.mxu0 %v534
    %736 = vmatprep.subr.bf16.mxu0 %v537
    %737 = vmatpush1.bf16.msra.mxu0 %v536
    %738 = vmatprep.subr.bf16.mxu0 %v539
    %739 = vmatpush1.bf16.msra.mxu0 %v538
    %740 = vmatprep.subr.bf16.mxu0 %v541
    %741 = vmatpush1.bf16.msra.mxu0 %v540
    %742 = vmatprep.subr.bf16.mxu0 %v543
    %743 = vmatpush1.bf16.msra.mxu0 %v542
    %744 = vmatprep.subr.bf16.mxu0 %v545
    %745 = vmatpush1.bf16.msra.mxu0 %v544
    %746 = vmatprep.subr.bf16.mxu0 %v547
    %747 = vmatpush1.bf16.msra.mxu0 %v546
    %748 = vmatprep.subr.bf16.mxu0 %v549
    %749 = vmatpush1.bf16.msra.mxu0 %v548
    %750 = vmatprep.subr.bf16.mxu0 %v551
    %751 = vmatpush1.bf16.msra.mxu0 %v550
    %752 = vmatprep.subr.bf16.mxu0 %v553
    %753 = vmatpush1.bf16.msra.mxu0 %v552
    %754 = vmatprep.subr.bf16.mxu0 %v555
    %755 = vmatpush1.bf16.msra.mxu0 %v554
    %756 = vmatprep.subr.bf16.mxu0 %v557
    %757 = vmatpush1.bf16.msra.mxu0 %v556
    %758 = vmatprep.subr.bf16.mxu0 %v559
    %759 = vmatpush1.bf16.msra.mxu0 %v558
    %760 = vmatprep.subr.bf16.mxu0 %v561
    %761 = vmatpush1.bf16.msra.mxu0 %v560
    %762 = vmatprep.mubr.bf16.mxu0 %v224
    %763 = vmatmul.mubr.bf16.gmra.mrb[0].mxu0 %v223
    %v764 = vpop.f32.mrb[0].mxu0
    %v765 = vadd.f32 %v194, %v764
    %v766 = vpop.f32.mrb[0].mxu0
    %v767 = vadd.f32 %v198, %v766
    %v768 = vpop.f32.mrb[0].mxu0
    %v769 = vadd.f32 %v194, %v768
    %v770 = vpop.f32.mrb[0].mxu0
    %v771 = vadd.f32 %v198, %v770
    %772 = vdwg.mxu0
    %773 = vmatprep.subr.bf16.mxu0 %v563
    %774 = vmatpush1.bf16.msra.mxu0 %v562
    %775 = vmatprep.subr.bf16.mxu0 %v565
    %776 = vmatpush1.bf16.msra.mxu0 %v564
    %777 = vmatprep.subr.bf16.mxu0 %v567
    %778 = vmatpush1.bf16.msra.mxu0 %v566
    %779 = vmatprep.subr.bf16.mxu0 %v569
    %780 = vmatpush1.bf16.msra.mxu0 %v568
    %781 = vmatprep.subr.bf16.mxu0 %v571
    %782 = vmatpush1.bf16.msra.mxu0 %v570
    %783 = vmatprep.subr.bf16.mxu0 %v573
    %784 = vmatpush1.bf16.msra.mxu0 %v572
    %785 = vmatprep.subr.bf16.mxu0 %v575
    %786 = vmatpush1.bf16.msra.mxu0 %v574
    %787 = vmatprep.subr.bf16.mxu0 %v577
    %788 = vmatpush1.bf16.msra.mxu0 %v576
    %789 = vmatprep.subr.bf16.mxu0 %v579
    %790 = vmatpush1.bf16.msra.mxu0 %v578
    %791 = vmatprep.subr.bf16.mxu0 %v581
    %792 = vmatpush1.bf16.msra.mxu0 %v580
    %793 = vmatprep.subr.bf16.mxu0 %v583
    %794 = vmatpush1.bf16.msra.mxu0 %v582
    %795 = vmatprep.subr.bf16.mxu0 %v585
    %796 = vmatpush1.bf16.msra.mxu0 %v584
    %797 = vmatprep.subr.bf16.mxu0 %v587
    %798 = vmatpush1.bf16.msra.mxu0 %v586
    %799 = vmatprep.subr.bf16.mxu0 %v589
    %800 = vmatpush1.bf16.msra.mxu0 %v588
    %801 = vmatprep.subr.bf16.mxu0 %v591
    %802 = vmatpush1.bf16.msra.mxu0 %v590
    %803 = vmatprep.subr.bf16.mxu0 %v593
    %804 = vmatpush1.bf16.msra.mxu0 %v592
    %805 = vmatprep.mubr.bf16.mxu0 %v226
    %806 = vmatmul.mubr.bf16.gmra.mrb[0].mxu0 %v225
    %v807 = vpop.f32.mrb[0].mxu0
    %v808 = vadd.f32 %v765, %v807
    %v809 = vpop.f32.mrb[0].mxu0
    %v810 = vadd.f32 %v767, %v809
    %v811 = vpop.f32.mrb[0].mxu0
    %v812 = vadd.f32 %v769, %v811
    %v813 = vpop.f32.mrb[0].mxu0
    %v814 = vadd.f32 %v771, %v813
    %815 = vdwg.mxu0
    %816 = vmatprep.subr.bf16.mxu0 %v595
    %817 = vmatpush1.bf16.msra.mxu0 %v594
    %818 = vmatprep.subr.bf16.mxu0 %v597
    %819 = vmatpush1.bf16.msra.mxu0 %v596
    %820 = vmatprep.subr.bf16.mxu0 %v599
    %821 = vmatpush1.bf16.msra.mxu0 %v598
    %822 = vmatprep.subr.bf16.mxu0 %v601
    %823 = vmatpush1.bf16.msra.mxu0 %v600
    %824 = vmatprep.subr.bf16.mxu0 %v603
    %825 = vmatpush1.bf16.msra.mxu0 %v602
    %826 = vmatprep.subr.bf16.mxu0 %v605
    %827 = vmatpush1.bf16.msra.mxu0 %v604
    %828 = vmatprep.subr.bf16.mxu0 %v607
    %829 = vmatpush1.bf16.msra.mxu0 %v606
    %830 = vmatprep.subr.bf16.mxu0 %v609
    %831 = vmatpush1.bf16.msra.mxu0 %v608
    %832 = vmatprep.subr.bf16.mxu0 %v611
    %833 = vmatpush1.bf16.msra.mxu0 %v610
    %834 = vmatprep.subr.bf16.mxu0 %v613
    %835 = vmatpush1.bf16.msra.mxu0 %v612
    %836 = vmatprep.subr.bf16.mxu0 %v615
    %837 = vmatpush1.bf16.msra.mxu0 %v614
    %838 = vmatprep.subr.bf16.mxu0 %v617
    %839 = vmatpush1.bf16.msra.mxu0 %v616
    %840 = vmatprep.subr.bf16.mxu0 %v619
    %841 = vmatpush1.bf16.msra.mxu0 %v618
    %842 = vmatprep.subr.bf16.mxu0 %v621
    %843 = vmatpush1.bf16.msra.mxu0 %v620
    %844 = vmatprep.subr.bf16.mxu0 %v623
    %845 = vmatpush1.bf16.msra.mxu0 %v622
    %846 = vmatprep.subr.bf16.mxu0 %v625
    %847 = vmatpush1.bf16.msra.mxu0 %v624
    %848 = vmatprep.mubr.bf16.mxu0 %v228
    %849 = vmatmul.mubr.bf16.gmra.mrb[0].mxu0 %v227
    %v850 = vpop.f32.mrb[0].mxu0
    %v851 = vadd.f32 %v808, %v850
    %v852 = vpop.f32.mrb[0].mxu0
    %v853 = vadd.f32 %v810, %v852
    %v854 = vpop.f32.mrb[0].mxu0
    %v855 = vadd.f32 %v812, %v854
    %v856 = vpop.f32.mrb[0].mxu0
    %v857 = vadd.f32 %v814, %v856
    %858 = vdwg.mxu0
    %859 = vmatprep.subr.bf16.mxu0 %v627
    %860 = vmatpush1.bf16.msra.mxu0 %v626
    %861 = vmatprep.subr.bf16.mxu0 0
    %862 = vmatpush1.bf16.msra.mxu0 0
    %863 = vmatprep.subr.bf16.mxu0 0
    %864 = vmatpush1.bf16.msra.mxu0 0
    %865 = vmatprep.subr.bf16.mxu0 0
    %866 = vmatpush1.bf16.msra.mxu0 0
    %867 = vmatprep.subr.bf16.mxu0 0
    %868 = vmatpush1.bf16.msra.mxu0 0
    %869 = vmatprep.subr.bf16.mxu0 0
    %870 = vmatpush1.bf16.msra.mxu0 0
    %871 = vmatprep.subr.bf16.mxu0 0
    %872 = vmatpush1.bf16.msra.mxu0 0
    %873 = vmatprep.subr.bf16.mxu0 0
    %874 = vmatpush1.bf16.msra.mxu0 0
    %875 = vmatprep.subr.bf16.mxu0 0
    %876 = vmatpush1.bf16.msra.mxu0 0
    %877 = vmatprep.subr.bf16.mxu0 0
    %878 = vmatpush1.bf16.msra.mxu0 0
    %879 = vmatprep.subr.bf16.mxu0 0
    %880 = vmatpush1.bf16.msra.mxu0 0
    %881 = vmatprep.subr.bf16.mxu0 0
    %882 = vmatpush1.bf16.msra.mxu0 0
    %883 = vmatprep.subr.bf16.mxu0 0
    %884 = vmatpush1.bf16.msra.mxu0 0
    %885 = vmatprep.subr.bf16.mxu0 0
    %886 = vmatpush1.bf16.msra.mxu0 0
    %887 = vmatprep.subr.bf16.mxu0 0
    %888 = vmatpush1.bf16.msra.mxu0 0
    %889 = vmatprep.subr.bf16.mxu0 0
    %890 = vmatpush1.bf16.msra.mxu0 0
    %891 = vmatprep.mubr.bf16.mxu0 0
    %892 = vmatmul.mubr.bf16.gmra.mrb[0].mxu0 %v728
    %v893 = vpop.f32.mrb[0].mxu0
    %v894 = vadd.f32 %v851, %v893
    %v895 = vpop.f32.mrb[0].mxu0
    %v896 = vadd.f32 %v853, %v895
    %v897 = vpop.f32.mrb[0].mxu0
    %v898 = vadd.f32 %v855, %v897
    %v899 = vpop.f32.mrb[0].mxu0
    %v900 = vadd.f32 %v857, %v899
    %901 = vdwg.mxu0
    %v902 = vmax.f32 %v894, 0.0
    %v903 = vmax.f32 %v896, 0.0
    %v904 = vmax.f32 %v898, 0.0
    %v905 = vmax.f32 %v900, 0.0
    %v906 = vpack.c.bf16 %v904, %v902
    %v907 = vpack.c.bf16 %v905, %v903
    %v908 = vld [vmem:[#allocation7] sm:$0xf]
    %v909 = vld [vmem:[#allocation7 + $0x4] sm:$0xf]
    %v910 = vld [vmem:[#allocation7 + $0x8] sm:$0xf]
    %v911 = vld [vmem:[#allocation7 + $0xc] sm:$0xf]
    %v912 = vld [vmem:[#allocation7 + $0x10] sm:$0xf]
    %v913 = vld [vmem:[#allocation7 + $0x14] sm:$0xf]
    %v914 = vld [vmem:[#allocation7 + $0x18] sm:$0xf]
    %v915 = vld [vmem:[#allocation7 + $0x1c] sm:$0xf]
    %v916 = vld [vmem:[#allocation7 + $0x20] sm:$0xf]
    %v917 = vld [vmem:[#allocation7 + $0x24] sm:$0xf]
    %v918 = vld [vmem:[#allocation7 + $0x28] sm:$0xf]
    %v919 = vld [vmem:[#allocation7 + $0x2c] sm:$0xf]
    %v920 = vld [vmem:[#allocation7 + $0x30] sm:$0xf]
    %v921 = vld [vmem:[#allocation7 + $0x34] sm:$0xf]
    %v922 = vld [vmem:[#allocation7 + $0x38] sm:$0xf]
    %v923 = vld [vmem:[#allocation7 + $0x3c] sm:$0xf]
    %v924 = vld [vmem:[#allocation7 + $0x40] sm:$0xf]
    %v925 = vld [vmem:[#allocation7 + $0x44] sm:$0xf]
    %v926 = vld [vmem:[#allocation7 + $0x48] sm:$0xf]
    %v927 = vld [vmem:[#allocation7 + $0x4c] sm:$0xf]
    %v928 = vld [vmem:[#allocation7 + $0x50] sm:$0xf]
    %v929 = vld [vmem:[#allocation7 + $0x54] sm:$0xf]
    %v930 = vld [vmem:[#allocation7 + $0x58] sm:$0xf]
    %v931 = vld [vmem:[#allocation7 + $0x5c] sm:$0xf]
    %v932 = vld [vmem:[#allocation7 + $0x60] sm:$0xf]
    %v933 = vld [vmem:[#allocation7 + $0x64] sm:$0xf]
    %v934 = vld [vmem:[#allocation7 + $0x68] sm:$0xf]
    %v935 = vld [vmem:[#allocation7 + $0x6c] sm:$0xf]
    %v936 = vld [vmem:[#allocation7 + $0x70] sm:$0xf]
    %v937 = vld [vmem:[#allocation7 + $0x74] sm:$0xf]
    %v938 = vld [vmem:[#allocation7 + $0x78] sm:$0xf]
    %v939 = vld [vmem:[#allocation7 + $0x7c] sm:$0xf]
    %v940 = vld [vmem:[%s4] sm:$0x1]
    %v942 = vlaneseq
    %v943 = vshrl.u32 %v942, 7
    %v944 = vsub.s32 0, %v943
    %v945 = vrot.slane %v940, %v944
    %v979 = vunpack.c.l.b16 %v908
    %v980 = vunpack.c.l.b16 %v909
    %v981 = vunpack.c.l.b16 %v910
    %v982 = vunpack.c.l.b16 %v911
    %v983 = vunpack.c.l.b16 %v912
    %v984 = vunpack.c.l.b16 %v913
    %v985 = vunpack.c.l.b16 %v914
    %v986 = vunpack.c.l.b16 %v915
    %v987 = vunpack.c.l.b16 %v916
    %v988 = vunpack.c.l.b16 %v917
    %v989 = vunpack.c.l.b16 %v918
    %v990 = vunpack.c.l.b16 %v919
    %v991 = vunpack.c.l.b16 %v920
    %v992 = vunpack.c.l.b16 %v921
    %v993 = vunpack.c.l.b16 %v922
    %v994 = vunpack.c.l.b16 %v923
    %v995 = vunpack.c.l.b16 %v924
    %v996 = vunpack.c.l.b16 %v925
    %v997 = vunpack.c.l.b16 %v926
    %v998 = vunpack.c.l.b16 %v927
    %v999 = vunpack.c.l.b16 %v928
    %v1000 = vunpack.c.l.b16 %v929
    %v1001 = vunpack.c.l.b16 %v930
    %v1002 = vunpack.c.l.b16 %v931
    %v1003 = vunpack.c.l.b16 %v932
    %v1004 = vunpack.c.l.b16 %v933
    %v1005 = vunpack.c.l.b16 %v934
    %v1006 = vunpack.c.l.b16 %v935
    %v1007 = vunpack.c.l.b16 %v936
    %v1008 = vunpack.c.l.b16 %v937
    %v1009 = vunpack.c.l.b16 %v938
    %v1010 = vunpack.c.l.b16 %v939
    %v1011 = vpack.c.b16 %v980, %v979
    %v1012 = vpack.c.b16 %v982, %v981
    %v1013 = vpack.c.b16 %v984, %v983
    %v1014 = vpack.c.b16 %v986, %v985
    %v1015 = vpack.c.b16 %v988, %v987
    %v1016 = vpack.c.b16 %v990, %v989
    %v1017 = vpack.c.b16 %v992, %v991
    %v1018 = vpack.c.b16 %v994, %v993
    %v1019 = vpack.c.b16 %v996, %v995
    %v1020 = vpack.c.b16 %v998, %v997
    %v1021 = vpack.c.b16 %v1000, %v999
    %v1022 = vpack.c.b16 %v1002, %v1001
    %v1023 = vpack.c.b16 %v1004, %v1003
    %v1024 = vpack.c.b16 %v1006, %v1005
    %v1025 = vpack.c.b16 %v1008, %v1007
    %v1026 = vpack.c.b16 %v1010, %v1009
    %1043 = vmatprep.subr.bf16.mxu0 0
    %1044 = vmatpush1.bf16.msra.mxu0 %v1011
    %1045 = vmatprep.subr.bf16.mxu0 0
    %1046 = vmatpush1.bf16.msra.mxu0 %v1012
    %1047 = vmatprep.subr.bf16.mxu0 0
    %1048 = vmatpush1.bf16.msra.mxu0 %v1013
    %1049 = vmatprep.subr.bf16.mxu0 0
    %1050 = vmatpush1.bf16.msra.mxu0 %v1014
    %1051 = vmatprep.subr.bf16.mxu0 0
    %1052 = vmatpush1.bf16.msra.mxu0 %v1015
    %1053 = vmatprep.subr.bf16.mxu0 0
    %1054 = vmatpush1.bf16.msra.mxu0 %v1016
    %1055 = vmatprep.subr.bf16.mxu0 0
    %1056 = vmatpush1.bf16.msra.mxu0 %v1017
    %1057 = vmatprep.subr.bf16.mxu0 0
    %1058 = vmatpush1.bf16.msra.mxu0 %v1018
    %1059 = vmatprep.subr.bf16.mxu0 0
    %1060 = vmatpush1.bf16.msra.mxu0 %v1019
    %1061 = vmatprep.subr.bf16.mxu0 0
    %1062 = vmatpush1.bf16.msra.mxu0 %v1020
    %1063 = vmatprep.subr.bf16.mxu0 0
    %1064 = vmatpush1.bf16.msra.mxu0 %v1021
    %1065 = vmatprep.subr.bf16.mxu0 0
    %1066 = vmatpush1.bf16.msra.mxu0 %v1022
    %1067 = vmatprep.subr.bf16.mxu0 0
    %1068 = vmatpush1.bf16.msra.mxu0 %v1023
    %1069 = vmatprep.subr.bf16.mxu0 0
    %1070 = vmatpush1.bf16.msra.mxu0 %v1024
    %1071 = vmatprep.subr.bf16.mxu0 0
    %1072 = vmatpush1.bf16.msra.mxu0 %v1025
    %1073 = vmatprep.subr.bf16.mxu0 0
    %1074 = vmatpush1.bf16.msra.mxu0 %v1026
    %1075 = vmatprep.mubr.bf16.mxu0 %v907
    %1076 = vmatmul.mubr.bf16.gmra.mrb[0].mxu0 %v906
    %v1077 = vpop.f32.mrb[0].mxu0
    %v1078 = vadd.f32 %v945, %v1077
    %v1079 = vpop.f32.mrb[0].mxu0
    %v1080 = vpop.f32.mrb[0].mxu0
    %v1081 = vadd.f32 %v945, %v1080
    %v1082 = vpop.f32.mrb[0].mxu0
    %1083 = vdwg.mxu0
    %v1084 = vmax.f32 %v1078, 0.0
    %v1085 = vmax.f32 %v1081, 0.0
    %v1086 = vpack.c.bf16 %v1085, %v1084
    %v1087 = vld [vmem:[#allocation8] sm:$0xf]
    %v1088 = vld [vmem:[#allocation8 + $0x4] sm:$0xf]
    %v1089 = vld [vmem:[#allocation8 + $0x8] sm:$0xf]
    %v1090 = vld [vmem:[#allocation8 + $0xc] sm:$0xf]
    %v1091 = vld [vmem:[#allocation8 + $0x10] sm:$0xf]
    %v1092 = vld [vmem:[#allocation8 + $0x14] sm:$0xf]
    %v1093 = vld [vmem:[#allocation8 + $0x18] sm:$0xf]
    %v1094 = vld [vmem:[#allocation8 + $0x1c] sm:$0xf]
    %v1095 = vld [vmem:[#allocation8 + $0x20] sm:$0xf]
    %v1096 = vld [vmem:[#allocation8 + $0x24] sm:$0xf]
    %v1097 = vld [vmem:[#allocation8 + $0x28] sm:$0xf]
    %v1098 = vld [vmem:[#allocation8 + $0x2c] sm:$0xf]
    %v1099 = vld [vmem:[#allocation8 + $0x30] sm:$0xf]
    %v1100 = vld [vmem:[#allocation8 + $0x34] sm:$0xf]
    %v1101 = vld [vmem:[#allocation8 + $0x38] sm:$0xf]
    %v1102 = vld [vmem:[#allocation8 + $0x3c] sm:$0xf]
    %v1103 = vld [vmem:[%s6] sm:$0x1]
    %v1105 = vlaneseq
    %v1106 = vshrl.u32 %v1105, 7
    %v1107 = vsub.s32 0, %v1106
    %v1108 = vrot.slane %v1103, %v1107
    %v1126 = vunpack.c.l.b16 %v1087
    %v1127 = vunpack.c.l.b16 %v1088
    %v1128 = vunpack.c.l.b16 %v1089
    %v1129 = vunpack.c.l.b16 %v1090
    %v1130 = vunpack.c.l.b16 %v1091
    %v1131 = vunpack.c.l.b16 %v1092
    %v1132 = vunpack.c.l.b16 %v1093
    %v1133 = vunpack.c.l.b16 %v1094
    %v1134 = vunpack.c.l.b16 %v1095
    %v1135 = vunpack.c.l.b16 %v1096
    %v1136 = vunpack.c.l.b16 %v1097
    %v1137 = vunpack.c.l.b16 %v1098
    %v1138 = vunpack.c.l.b16 %v1099
    %v1139 = vunpack.c.l.b16 %v1100
    %v1140 = vunpack.c.l.b16 %v1101
    %v1141 = vunpack.c.l.b16 %v1102
    %v1142 = vpack.c.b16 %v1127, %v1126
    %v1143 = vpack.c.b16 %v1129, %v1128
    %v1144 = vpack.c.b16 %v1131, %v1130
    %v1145 = vpack.c.b16 %v1133, %v1132
    %v1146 = vpack.c.b16 %v1135, %v1134
    %v1147 = vpack.c.b16 %v1137, %v1136
    %v1148 = vpack.c.b16 %v1139, %v1138
    %v1149 = vpack.c.b16 %v1141, %v1140
    %1158 = vmatprep.subr.bf16.mxu0 0
    %1159 = vmatpush1.bf16.msra.mxu0 %v1142
    %1160 = vmatprep.subr.bf16.mxu0 0
    %1161 = vmatpush1.bf16.msra.mxu0 %v1143
    %1162 = vmatprep.subr.bf16.mxu0 0
    %1163 = vmatpush1.bf16.msra.mxu0 %v1144
    %1164 = vmatprep.subr.bf16.mxu0 0
    %1165 = vmatpush1.bf16.msra.mxu0 %v1145
    %1166 = vmatprep.subr.bf16.mxu0 0
    %1167 = vmatpush1.bf16.msra.mxu0 %v1146
    %1168 = vmatprep.subr.bf16.mxu0 0
    %1169 = vmatpush1.bf16.msra.mxu0 %v1147
    %1170 = vmatprep.subr.bf16.mxu0 0
    %1171 = vmatpush1.bf16.msra.mxu0 %v1148
    %1172 = vmatprep.subr.bf16.mxu0 0
    %1173 = vmatpush1.bf16.msra.mxu0 %v1149
    %1174 = vmatprep.subr.bf16.mxu0 0
    %1175 = vmatpush1.bf16.msra.mxu0 0
    %1176 = vmatprep.subr.bf16.mxu0 0
    %1177 = vmatpush1.bf16.msra.mxu0 0
    %1178 = vmatprep.subr.bf16.mxu0 0
    %1179 = vmatpush1.bf16.msra.mxu0 0
    %1180 = vmatprep.subr.bf16.mxu0 0
    %1181 = vmatpush1.bf16.msra.mxu0 0
    %1182 = vmatprep.subr.bf16.mxu0 0
    %1183 = vmatpush1.bf16.msra.mxu0 0
    %1184 = vmatprep.subr.bf16.mxu0 0
    %1185 = vmatpush1.bf16.msra.mxu0 0
    %1186 = vmatprep.subr.bf16.mxu0 0
    %1187 = vmatpush1.bf16.msra.mxu0 0
    %1188 = vmatprep.subr.bf16.mxu0 0
    %1189 = vmatpush1.bf16.msra.mxu0 0
    %1190 = vmatprep.mubr.bf16.mxu0 0
    %1191 = vmatmul.mubr.bf16.gmra.mrb[0].mxu0 %v1086
    %v1192 = vpop.f32.mrb[0].mxu0
    %v1193 = vadd.f32 %v1108, %v1192
    %v1194 = vpop.f32.mrb[0].mxu0
    %v1195 = vpop.f32.mrb[0].mxu0
    %v1196 = vadd.f32 %v1108, %v1195
    %v1197 = vpop.f32.mrb[0].mxu0
    %1198 = vdwg.mxu0
    %1199 = vmax.xlane.f32.xlu0 %v1193
    %v1200 = vpop.xlane.xlu0 %1199
    %1201 = vmax.xlane.f32.xlu0 %v1196
    %v1202 = vpop.xlane.xlu0 %1201
    %v1203 = vsub.f32 %v1193, %v1200
    %v1204 = vsub.f32 %v1196, %v1202
    %v1205 = vmul.f32 %v1203, 1.442695
    %v1206 = vpow.pop %v1205
    %v1207 = vmul.f32 %v1204, 1.442695
    %v1208 = vpow.pop %v1207
    %1209 = vadd.xlane.f32.xlu0 %v1206
    %v1210 = vpop.xlane.xlu0 %1209
    %1211 = vadd.xlane.f32.xlu0 %v1208
    %v1212 = vpop.xlane.xlu0 %1211
    %v1213 = vlog2.pop %v1210
    %v1214 = vmul.f32 %v1213, 0.6931472
    %v1215 = vlog2.pop %v1212
    %v1216 = vmul.f32 %v1215, 0.6931472
    %v1217 = vsub.f32 %v1203, %v1214
    %v1218 = vsub.f32 %v1204, %v1216
    %1219 = vst [vmem:[#allocation10] sm:$0xff] %v1217
    %1220 = vst [vmem:[#allocation10 + $0x8] sm:$0xff] %v1218
    // Predicated region
    $region46: #{tpu_custom_call.1} parent=1 // pred_check
      _
    $region47: #{tpu_custom_call.1} parent=1 // pred_check_branch
      %1222 = sbr.rel (0) target = $region49
    $region48: #{tpu_custom_call.1} parent=1 // pred_region
      %s1224 = ssub.s32 256, 256
      %1225 = vsyncadd [#allocation4], %s1224
      %s1226 = sshll.u32 [#allocation10], 4
      %s1227 = int_to_ptr.vmem [resolvable:$true] %s1226
      %1232 = dma.vmem_to_hbm [thread:$0]  %s1227, 256, %s7, [#allocation4], 128, 128, 8
    $region49: #{tpu_custom_call.1} parent=1 // pred_fallthru
      _
    // Predicated region
    $region50: #{tpu_custom_call.1} parent=1 // pred_check
      _
    $region51: #{tpu_custom_call.1} parent=1 // pred_check_branch
      %1234 = sbr.rel (0) target = $region53
    $region52: #{tpu_custom_call.1} parent=1 // pred_region
      %1235 = dma.done [#allocation4], 256
    $region53: #{tpu_custom_call.1} parent=1 // pred_fallthru
      _
    %1236 = vsyncpa [#allocation3], 1
    %1237 = vsyncpa [#allocation6], 1
    %1238 = vsyncpa [#allocation9], 1
    %1239 = vsyncpa [#allocation4], 1

</llo_original>
